<compile_context>
chip_gen: v7x
topology: tpu7x:2x2x1
jax: 0.10.0
libtpu: 0.0.40
codegen_flags: <defaults>
</compile_context>

<pallas_src>
import jax
import jax.numpy as jnp
import numpy as np
from jax import lax
from jax.experimental import pallas as pl
from jax.experimental.pallas import tpu as pltpu


def _pick_row_strip(H, W):
    """Rows per output strip TH: TH | H and TH*W % 128 == 0 (lane-dense output
    slab); prefer sublane-aligned strips (TH % 8 == 0); fall back to whole image."""
    fallback = None
    for th in range(1, H + 1):
        if H % th or (th * W) % 128:
            continue
        if th % 8 == 0:
            return th
        if fallback is None:
            fallback = th
    return fallback if fallback is not None else H


def _make_sepconv_kernel(W, TH):
    THW = TH * W

    def kernel(prev_ref, cur_ref, next_ref, wc_ref, o_ref):
        # prev/cur/next_ref: (1, Cin, TH*W)  row strips hs-1 / hs / hs+1 (clamped)
        # wc_ref           : (Cout, 9*Cin)   folded depthwise*pointwise weights
        # o_ref            : (1, Cout, TH*W) lane-dense output strip
        cin = cur_ref.shape[1]
        hs = pl.program_id(1)
        n_hs = pl.num_programs(1)

        cur = cur_ref[0]                                       # (Cin, TH*W)
        top = prev_ref[0, :, (TH - 1) * W:TH * W]              # last row of strip hs-1
        bot = next_ref[0, :, 0:W]                              # first row of strip hs+1
        # image-boundary strips: halo rows are the conv's zero padding.
        top = jnp.where(hs > 0, top, jnp.zeros_like(top))
        bot = jnp.where(hs < n_hs - 1, bot, jnp.zeros_like(bot))

        # Flat haloed slab: [zero lane | halo row | TH rows | halo row | zero lane].
        # Each 3x3 tap (dy, dx) is then the contiguous window starting at lane
        # offset dy*W + dx; the w+/-1 shifts that wrap across a row boundary land
        # on a neighbouring row's element and are masked below.
        zlane = jnp.zeros((cin, 1), cur.dtype)
        slab = jnp.concatenate([zlane, top, cur, bot, zlane], axis=1)  # (Cin, THW+2W+2)

        col = lax.broadcasted_iota(jnp.int32, (1, THW), 1) % W
        not_first_col = col != 0              # kills dx=0 taps at w == 0
        not_last_col = col != (W - 1)         # kills dx=2 taps at w == W-1

        parts = []
        for dy in range(3):
            for dx in range(3):
                off = dy * W + dx
                tap = slab[:, off:off + THW]                   # (Cin, TH*W)
                if dx == 0:
                    tap = jnp.where(not_first_col, tap, jnp.zeros_like(tap))
                elif dx == 2:
                    tap = jnp.where(not_last_col, tap, jnp.zeros_like(tap))
                parts.append(tap)
        patches = jnp.concatenate(parts, axis=0)               # (9*Cin, TH*W)

        # Single MXU contraction over k = (dy, dx, ci); f32 accumulation.
        acc = jnp.dot(wc_ref[...], patches,
                      preferred_element_type=jnp.float32)      # (Cout, TH*W)
        o_ref[0] = acc.astype(o_ref.dtype)

    return kernel


def separable_conv2d(x_nchw, w_depthwise, w_pointwise):
    """x_nchw: (N, Cin, H, W); w_depthwise: (Cin, 1, 3, 3); w_pointwise:
    (Cout, Cin, 1, 1) (PyTorch layouts).  Returns (N, Cout, H, W)."""
    N, Cin, H, W = x_nchw.shape
    Cout = w_pointwise.shape[0]
    dtype = x_nchw.dtype

    # Fold the two convs into one im2col weight:
    #   Wc[co, (dy*3+dx)*Cin + ci] = Wdw[ci, dy, dx] * Wpw[co, ci]
    wdw = w_depthwise[:, 0, :, :].astype(jnp.float32)          # (Cin, 3, 3)
    wpw = w_pointwise[:, :, 0, 0].astype(jnp.float32)          # (Cout, Cin)
    wc = jnp.einsum("cyx,oc->oyxc", wdw, wpw).reshape(Cout, 9 * Cin).astype(dtype)

    TH = _pick_row_strip(H, W)
    n_strips = H // TH
    THW = TH * W

    x_flat = x_nchw.reshape(N, Cin, H * W)      # contiguous reshape (no copy)

    out_flat = pl.pallas_call(
        _make_sepconv_kernel(W, TH),
        out_shape=jax.ShapeDtypeStruct((N, Cout, H * W), dtype),
        grid_spec=pltpu.PrefetchScalarGridSpec(
            num_scalar_prefetch=0,
            grid=(N, n_strips),
            in_specs=[
                # previous / current / next row strips of the same input array.
                pl.BlockSpec((1, Cin, THW),
                             lambda n, hs: (n, 0, jnp.maximum(hs - 1, 0))),
                pl.BlockSpec((1, Cin, THW),
                             lambda n, hs: (n, 0, hs)),
                pl.BlockSpec((1, Cin, THW),
                             lambda n, hs: (n, 0, jnp.minimum(hs + 1, n_strips - 1))),
                pl.BlockSpec((Cout, 9 * Cin), lambda n, hs: (0, 0)),
            ],
            out_specs=pl.BlockSpec((1, Cout, THW), lambda n, hs: (n, 0, hs)),
        ),
        compiler_params=pltpu.CompilerParams(
            dimension_semantics=("parallel", "parallel")),
    )(x_flat, x_flat, x_flat, wc)

    return out_flat.reshape(N, Cout, H, W)      # contiguous reshape (no copy)


def _reference(x_nchw, w_depthwise, w_pointwise):
    # Pure-JAX reference mirroring torch.nn.Conv2d semantics.
    Cin = x_nchw.shape[1]
    dw = lax.conv_general_dilated(
        x_nchw, w_depthwise, window_strides=(1, 1), padding=((1, 1), (1, 1)),
        dimension_numbers=("NCHW", "OIHW", "NCHW"), feature_group_count=Cin)
    pw = lax.conv_general_dilated(
        dw, w_pointwise, window_strides=(1, 1), padding=((0, 0), (0, 0)),
        dimension_numbers=("NCHW", "OIHW", "NCHW"))
    return pw


if __name__ == "__main__":
    key = jax.random.PRNGKey(0)
    k_x, k_dw, k_pw = jax.random.split(key, 3)

    N, Cin, Cout, H, W = 2, 4, 8, 16, 16
    x = jax.random.normal(k_x, (N, Cin, H, W), dtype=jnp.float32)
    # Deterministic synthetic parameters (shapes from the module __init__).
    w_depthwise = jax.random.normal(k_dw, (Cin, 1, 3, 3), dtype=jnp.float32) * 0.1
    w_pointwise = jax.random.normal(k_pw, (Cout, Cin, 1, 1), dtype=jnp.float32) * 0.1

    out = jax.block_until_ready(separable_conv2d(x, w_depthwise, w_pointwise))
    ref = jax.block_until_ready(_reference(x, w_depthwise, w_pointwise))
    np.testing.assert_allclose(np.asarray(out), np.asarray(ref),
                               rtol=1e-4, atol=1e-5)

    print("KERNEL_OK")
</pallas_src>

<mosaic_0001>
module attributes {stable_mosaic.version = 11 : i64} {
  func.func @kernel(%arg0: i32, %arg1: i32, %arg2: memref<1x4x128xf32, #tpu.memory_space<vmem>>, %arg3: memref<1x4x128xf32, #tpu.memory_space<vmem>>, %arg4: memref<1x4x128xf32, #tpu.memory_space<vmem>>, %arg5: memref<8x36xf32, #tpu.memory_space<vmem>>, %arg6: memref<1x8x128xf32, #tpu.memory_space<vmem>>) attributes {dimension_semantics = [#tpu.dimension_semantics<parallel>, #tpu.dimension_semantics<parallel>], iteration_bounds = array<i64: 2, 2>, scalar_prefetch = 0 : i64, scratch_operands = 0 : i64, tpu.core_type = #tpu.core_type<tc>, window_params = [{transform_indices = @transform_0, window_bounds = array<i64: 1, 4, 128>}, {transform_indices = @transform_1, window_bounds = array<i64: 1, 4, 128>}, {transform_indices = @transform_2, window_bounds = array<i64: 1, 4, 128>}, {pipeline_mode = #tpu.pipeline_mode<synchronous>, transform_indices = @transform_3, window_bounds = array<i64: 8, 36>}, {transform_indices = @transform_4, window_bounds = array<i64: 1, 8, 128>}]} {
    %c0 = arith.constant 0 : index
    %c0_0 = arith.constant 0 : index
    %c0_1 = arith.constant 0 : index
    %0 = vector.load %arg3[%c0, %c0_0, %c0_1] : memref<1x4x128xf32, #tpu.memory_space<vmem>>, vector<1x4x128xf32>
    %1 = vector.shape_cast %0 : vector<1x4x128xf32> to vector<4x128xf32>
    %c0_2 = arith.constant 0 : index
    %c0_3 = arith.constant 0 : index
    %c112 = arith.constant 112 : index
    %2 = vector.load %arg2[%c0_2, %c0_3, %c112] : memref<1x4x128xf32, #tpu.memory_space<vmem>>, vector<1x4x16xf32>
    %3 = vector.shape_cast %2 : vector<1x4x16xf32> to vector<4x16xf32>
    %c0_4 = arith.constant 0 : index
    %c0_5 = arith.constant 0 : index
    %c0_6 = arith.constant 0 : index
    %4 = vector.load %arg4[%c0_4, %c0_5, %c0_6] : memref<1x4x128xf32, #tpu.memory_space<vmem>>, vector<1x4x16xf32>
    %5 = vector.shape_cast %4 : vector<1x4x16xf32> to vector<4x16xf32>
    %c0_i32 = arith.constant 0 : i32
    %6 = arith.cmpi sgt, %arg1, %c0_i32 : i32
    %cst = arith.constant 0.000000e+00 : f32
    %7 = vector.broadcast %cst : f32 to vector<4x16xf32>
    %8 = arith.select %6, %3, %7 : vector<4x16xf32>
    %c1_i32 = arith.constant 1 : i32
    %9 = arith.cmpi slt, %arg1, %c1_i32 : i32
    %cst_7 = arith.constant 0.000000e+00 : f32
    %10 = vector.broadcast %cst_7 : f32 to vector<4x16xf32>
    %11 = arith.select %9, %5, %10 : vector<4x16xf32>
    %cst_8 = arith.constant 0.000000e+00 : f32
    %12 = vector.broadcast %cst_8 : f32 to vector<4x1xf32>
    %13 = tpu.concatenate %12, %8, %1, %11, %12 in 1 : vector<4x1xf32>, vector<4x16xf32>, vector<4x128xf32>, vector<4x16xf32>, vector<4x1xf32> -> vector<4x162xf32>
    %14 = tpu.iota {dimensions = array<i32: 1>} : vector<1x128xi32>
    %c16_i32 = arith.constant 16 : i32
    %c0_i32_9 = arith.constant 0 : i32
    %15 = arith.cmpi eq, %c16_i32, %c0_i32_9 : i32
    %c1_i32_10 = arith.constant 1 : i32
    %16 = arith.select %15, %c1_i32_10, %c16_i32 : i32
    %17 = vector.broadcast %16 : i32 to vector<1x128xi32>
    %18 = arith.remsi %14, %17 : vector<1x128xi32>
    %c0_i32_11 = arith.constant 0 : i32
    %19 = vector.broadcast %c0_i32_11 : i32 to vector<1x128xi32>
    %20 = arith.cmpi ne, %18, %19 : vector<1x128xi32>
    %c0_i32_12 = arith.constant 0 : i32
    %21 = vector.broadcast %c0_i32_12 : i32 to vector<1x128xi32>
    %22 = arith.cmpi slt, %18, %21 : vector<1x128xi32>
    %c0_i32_13 = arith.constant 0 : i32
    %23 = arith.cmpi slt, %16, %c0_i32_13 : i32
    %24 = vector.broadcast %23 : i1 to vector<1x128xi1>
    %25 = vector.broadcast %24 : vector<1x128xi1> to vector<1x128xi1>
    %26 = arith.xori %22, %25 : vector<1x128xi1>
    %27 = arith.andi %26, %20 : vector<1x128xi1>
    %28 = vector.broadcast %16 : i32 to vector<1x128xi32>
    %29 = arith.addi %18, %28 : vector<1x128xi32>
    %30 = arith.select %27, %29, %18 : vector<1x128xi1>, vector<1x128xi32>
    %c0_i32_14 = arith.constant 0 : i32
    %31 = vector.broadcast %c0_i32_14 : i32 to vector<1x128xi32>
    %32 = arith.cmpi ne, %30, %31 : vector<1x128xi32>
    %c15_i32 = arith.constant 15 : i32
    %33 = vector.broadcast %c15_i32 : i32 to vector<1x128xi32>
    %34 = arith.cmpi ne, %30, %33 : vector<1x128xi32>
    %35 = vector.extract_strided_slice %13 {offsets = [0, 0], sizes = [4, 128], strides = [1, 1]} : vector<4x162xf32> to vector<4x128xf32>
    %cst_15 = arith.constant 0.000000e+00 : f32
    %36 = vector.broadcast %cst_15 : f32 to vector<4x128xf32>
    %37 = vector.shape_cast %32 : vector<1x128xi1> to vector<1x128xi1>
    %38 = vector.broadcast %37 : vector<1x128xi1> to vector<4x128xi1>
    %39 = arith.select %38, %35, %36 : vector<4x128xi1>, vector<4x128xf32>
    %40 = vector.extract_strided_slice %13 {offsets = [0, 1], sizes = [4, 128], strides = [1, 1]} : vector<4x162xf32> to vector<4x128xf32>
    %41 = vector.extract_strided_slice %13 {offsets = [0, 2], sizes = [4, 128], strides = [1, 1]} : vector<4x162xf32> to vector<4x128xf32>
    %cst_16 = arith.constant 0.000000e+00 : f32
    %42 = vector.broadcast %cst_16 : f32 to vector<4x128xf32>
    %43 = vector.shape_cast %34 : vector<1x128xi1> to vector<1x128xi1>
    %44 = vector.broadcast %43 : vector<1x128xi1> to vector<4x128xi1>
    %45 = arith.select %44, %41, %42 : vector<4x128xi1>, vector<4x128xf32>
    %46 = vector.extract_strided_slice %13 {offsets = [0, 16], sizes = [4, 128], strides = [1, 1]} : vector<4x162xf32> to vector<4x128xf32>
    %cst_17 = arith.constant 0.000000e+00 : f32
    %47 = vector.broadcast %cst_17 : f32 to vector<4x128xf32>
    %48 = vector.shape_cast %32 : vector<1x128xi1> to vector<1x128xi1>
    %49 = vector.broadcast %48 : vector<1x128xi1> to vector<4x128xi1>
    %50 = arith.select %49, %46, %47 : vector<4x128xi1>, vector<4x128xf32>
    %51 = vector.extract_strided_slice %13 {offsets = [0, 17], sizes = [4, 128], strides = [1, 1]} : vector<4x162xf32> to vector<4x128xf32>
    %52 = vector.extract_strided_slice %13 {offsets = [0, 18], sizes = [4, 128], strides = [1, 1]} : vector<4x162xf32> to vector<4x128xf32>
    %cst_18 = arith.constant 0.000000e+00 : f32
    %53 = vector.broadcast %cst_18 : f32 to vector<4x128xf32>
    %54 = vector.shape_cast %34 : vector<1x128xi1> to vector<1x128xi1>
    %55 = vector.broadcast %54 : vector<1x128xi1> to vector<4x128xi1>
    %56 = arith.select %55, %52, %53 : vector<4x128xi1>, vector<4x128xf32>
    %57 = vector.extract_strided_slice %13 {offsets = [0, 32], sizes = [4, 128], strides = [1, 1]} : vector<4x162xf32> to vector<4x128xf32>
    %cst_19 = arith.constant 0.000000e+00 : f32
    %58 = vector.broadcast %cst_19 : f32 to vector<4x128xf32>
    %59 = vector.shape_cast %32 : vector<1x128xi1> to vector<1x128xi1>
    %60 = vector.broadcast %59 : vector<1x128xi1> to vector<4x128xi1>
    %61 = arith.select %60, %57, %58 : vector<4x128xi1>, vector<4x128xf32>
    %62 = vector.extract_strided_slice %13 {offsets = [0, 33], sizes = [4, 128], strides = [1, 1]} : vector<4x162xf32> to vector<4x128xf32>
    %63 = vector.extract_strided_slice %13 {offsets = [0, 34], sizes = [4, 128], strides = [1, 1]} : vector<4x162xf32> to vector<4x128xf32>
    %cst_20 = arith.constant 0.000000e+00 : f32
    %64 = vector.broadcast %cst_20 : f32 to vector<4x128xf32>
    %65 = vector.shape_cast %34 : vector<1x128xi1> to vector<1x128xi1>
    %66 = vector.broadcast %65 : vector<1x128xi1> to vector<4x128xi1>
    %67 = arith.select %66, %63, %64 : vector<4x128xi1>, vector<4x128xf32>
    %68 = tpu.concatenate %39, %40, %45, %50, %51, %56, %61, %62, %67 in 0 : vector<4x128xf32>, vector<4x128xf32>, vector<4x128xf32>, vector<4x128xf32>, vector<4x128xf32>, vector<4x128xf32>, vector<4x128xf32>, vector<4x128xf32>, vector<4x128xf32> -> vector<36x128xf32>
    %c0_21 = arith.constant 0 : index
    %c0_22 = arith.constant 0 : index
    %69 = vector.load %arg5[%c0_21, %c0_22] : memref<8x36xf32, #tpu.memory_space<vmem>>, vector<8x36xf32>
    %cst_23 = arith.constant dense<0.000000e+00> : vector<8x128xf32>
    %70 = tpu.matmul %69, %68, %cst_23 {dimension_numbers = #tpu.dot_dimension_numbers<[1], [0], [0], [1], [0, 0, 1, 1], [], []>} : vector<8x36xf32>, vector<36x128xf32>, vector<8x128xf32> -> vector<8x128xf32>
    %c0_24 = arith.constant 0 : index
    %c0_25 = arith.constant 0 : index
    %c0_26 = arith.constant 0 : index
    %71 = vector.load %arg6[%c0_24, %c0_25, %c0_26] : memref<1x8x128xf32, #tpu.memory_space<vmem>>, vector<1x8x128xf32>
    %72 = vector.shape_cast %71 : vector<1x8x128xf32> to vector<8x128xf32>
    %73 = vector.shape_cast %70 : vector<8x128xf32> to vector<1x8x128xf32>
    tpu.vector_store %arg6[%c0_24, %c0_25, %c0_26], %73 {strides = array<i32>} : memref<1x8x128xf32, #tpu.memory_space<vmem>>, vector<1x8x128xf32>,
    return
  }
  func.func @transform_0(%arg0: i32, %arg1: i32) -> (i32, i32, i32) {
    %c1_i32 = arith.constant 1 : i32
    %0 = arith.subi %arg1, %c1_i32 : i32
    %c0_i32 = arith.constant 0 : i32
    %1 = arith.maxsi %0, %c0_i32 : i32
    %c0_i32_0 = arith.constant 0 : i32
    %c0_i32_1 = arith.constant 0 : i32
    return %arg0, %c0_i32_0, %1 : i32, i32, i32
  }
  func.func @transform_1(%arg0: i32, %arg1: i32) -> (i32, i32, i32) {
    %c0_i32 = arith.constant 0 : i32
    %c0_i32_0 = arith.constant 0 : i32
    return %arg0, %c0_i32, %arg1 : i32, i32, i32
  }
  func.func @transform_2(%arg0: i32, %arg1: i32) -> (i32, i32, i32) {
    %c1_i32 = arith.constant 1 : i32
    %0 = arith.addi %arg1, %c1_i32 : i32
    %c1_i32_0 = arith.constant 1 : i32
    %1 = arith.minsi %0, %c1_i32_0 : i32
    %c0_i32 = arith.constant 0 : i32
    %c0_i32_1 = arith.constant 0 : i32
    return %arg0, %c0_i32, %1 : i32, i32, i32
  }
  func.func @transform_3(%arg0: i32, %arg1: i32) -> (i32, i32) {
    %c0_i32 = arith.constant 0 : i32
    %c0_i32_0 = arith.constant 0 : i32
    %c0_i32_1 = arith.constant 0 : i32
    return %c0_i32, %c0_i32_0 : i32, i32
  }
  func.func @transform_4(%arg0: i32, %arg1: i32) -> (i32, i32, i32) {
    %c0_i32 = arith.constant 0 : i32
    %c0_i32_0 = arith.constant 0 : i32
    return %arg0, %c0_i32, %arg1 : i32, i32, i32
  }
}

</mosaic_0001>

<llo_original>
// kernel: tpu_custom_call.1
$region0: #{tpu_custom_call.1}
  #allocation0 [shape = 'u32[]', space=smem, size = 0x4, offset = 0x4, fixed_abs, tag = 'smem constant byte address 0x4 - core index']
  #allocation1 [shape = 'u32[144,128]{1,0:T(1,128)}', space=vmem, size = 0x12000, scoped, tag = 'internal scratch']
  %s0 = inlined_call_operand.hbm [shape: f32[2,4,256], index: 0, kind: input, shape index: {}]
  %s1 = inlined_call_operand.hbm [shape: f32[2,4,256], index: 1, kind: input, shape index: {}]
  %s2 = inlined_call_operand.hbm [shape: f32[2,4,256], index: 2, kind: input, shape index: {}]
  %s3 = inlined_call_operand.vmem [shape: f32[8,36], index: 3, kind: input, shape index: {}]
  %s4 = inlined_call_operand.hbm [shape: f32[2,8,256], index: 4, kind: output, shape index: {}]
  %s5 = sld [smem:[#allocation0]]
  $region61: #{tpu_custom_call.1} parent=0
    _
  %s7 = ssub.s32 1, %s5
  %s8 = scalar_select 0, %s7, %s5
  $region1: #{tpu_custom_call.1} parent=0
    #allocation2 [shape = 'u8[4096]{0}', space=vmem, size = 0x1000, scoped, tag = 'input window, operand 0']
    #allocation3 [shape = 's32[2]{0}', space=sflag, size = 0x8, scoped, tag = 'scoped memory for tpu_custom_call.1']
    #allocation4 [shape = 's32[2]{0}', space=sflag, size = 0x8, scoped, tag = 'scoped memory for tpu_custom_call.1']
    #allocation5 [shape = 'u8[4096]{0}', space=vmem, size = 0x1000, scoped, tag = 'input window, operand 1']
    #allocation6 [shape = 's32[2]{0}', space=sflag, size = 0x8, scoped, tag = 'scoped memory for tpu_custom_call.1']
    #allocation7 [shape = 'u8[4096]{0}', space=vmem, size = 0x1000, scoped, tag = 'input window, operand 2']
    #allocation8 [shape = 'u8[8192]{0}', space=vmem, size = 0x2000, scoped, tag = 'output window, operand 0']
    %9 = vsyncpa [#allocation3], 0
    %s10 = scalar_lea.sflag [#allocation3], 1
    %11 = vsyncpa %s10, 0
    %12 = vsyncpa [#allocation6], 0
    %s13 = scalar_lea.sflag [#allocation6], 1
    %14 = vsyncpa %s13, 0
    %15 = vsyncpa [#allocation4], 0
    %s16 = scalar_lea.sflag [#allocation4], 1
    %17 = vsyncpa %s16, 0
    loop: start=0, step=1, limit=6
    $region2: #{tpu_custom_call.1} parent=1 // loop_pre_header
      _
    $region3: #{tpu_custom_call.1} parent=1 // loop_header
      %s19 = sphi 0, %s23
      %p20 = scmp.ge.s32.totalorder %s19, 6
      %s26 = sphi 0, %s38
      %s27 = sphi 0, %s34
      %s28 = sphi 0, %s26
      %s29 = sphi 0, %s27
      %s30 = sphi 0, %s28
      %s31 = sphi 0, %s29
      %s49 = sphi 0, %s51
      %s52 = sphi 0, %s49
      %s53 = sphi 0, %s52
      %s69 = sphi 0, %s53
      %s77 = sphi 0, %s79
      %s80 = sphi 0, %s77
      %s81 = sphi 0, %s80
      %s97 = sphi 0, %s81
      %s111 = sphi 0, %s113
      %s114 = sphi 0, %s111
      %s115 = sphi 0, %s114
      %s131 = sphi 0, %s115
      %s135 = sphi 0, %s135
      %s137 = sphi 0, %s135
      %s138 = sphi 0, %s137
      %s152 = sphi 0, %s138
      %s160 = sphi 0, %s162
      %s163 = sphi 0, %s160
      %s164 = sphi 0, %s163
      %s180 = sphi 0, %s164
    $region4: #{tpu_custom_call.1} parent=1 // loop_header_branch
      %22 = sbr.rel (%p20) target = $region8
    $region5: #{tpu_custom_call.1} parent=1 // loop_body
      %s24 = ssub.s32 %s19, 1
      %s25 = ssub.s32 %s19, 2
      %s32 = sadd.s32 1, %s27
      %p33 = scmp.ge.s32.totalorder %s32, 2
      %s34 = scalar_select %p33, 0, %s32
      %s35 = sadd.s32 1, %s26
      %s36 = scalar_select %p33, %s35, %s26
      %p37 = scmp.ge.s32.totalorder %s36, 2
      %s38 = scalar_select %p37, 0, %s36
      %s39 = ssub.s32 %s27, 1
      %p40 = scmp.gt.s32.totalorder %s39, 0
      %s41 = scalar_select %p40, %s39, 0
      %s42 = ssub.s32 %s34, 1
      %p43 = scmp.gt.s32.totalorder %s42, 0
      %s44 = scalar_select %p43, %s42, 0
      %s45 = ssub.s32 %s26, %s38
      %s46 = ssub.s32 %s41, %s44
      %s47 = sor.u32 %s45, %s46
      %p48 = scmp.eq.s32.totalorder %s47, 0
      %s50 = sadd.s32 %s49, 1
      %s51 = scalar_select %p48, %s49, %s50
      %p54 = pneg %p48
      %p55 = scmp.eq.s32.totalorder %s19, 3
      %p56 = por %p54, %p55
      %p57 = scmp.ne.s32.totalorder %s49, %s52
      %p58 = scmp.eq.s32.totalorder %s19, 0
      %p59 = por %p57, %p58
      %p60 = scmp.ne.s32.totalorder %s49, %s52
      %p61 = scmp.eq.s32.totalorder %s24, 3
      %p62 = por %p60, %p61
      %p63 = scmp.ne.s32.totalorder %s52, %s53
      %p64 = scmp.eq.s32.totalorder %s24, 0
      %p65 = por %p63, %p64
      %p66 = scmp.ne.s32.totalorder %s52, %s53
      %p67 = scmp.eq.s32.totalorder %s25, 3
      %p68 = por %p66, %p67
      %p70 = scmp.ne.s32.totalorder %s53, %s69
      %p71 = scmp.eq.s32.totalorder %s25, 0
      %p72 = por %p70, %p71
      %s73 = ssub.s32 %s26, %s38
      %s74 = ssub.s32 %s27, %s34
      %s75 = sor.u32 %s73, %s74
      %p76 = scmp.eq.s32.totalorder %s75, 0
      %s78 = sadd.s32 %s77, 1
      %s79 = scalar_select %p76, %s77, %s78
      %p82 = pneg %p76
      %p83 = scmp.eq.s32.totalorder %s19, 3
      %p84 = por %p82, %p83
      %p85 = scmp.ne.s32.totalorder %s77, %s80
      %p86 = scmp.eq.s32.totalorder %s19, 0
      %p87 = por %p85, %p86
      %p88 = scmp.ne.s32.totalorder %s77, %s80
      %p89 = scmp.eq.s32.totalorder %s24, 3
      %p90 = por %p88, %p89
      %p91 = scmp.ne.s32.totalorder %s80, %s81
      %p92 = scmp.eq.s32.totalorder %s24, 0
      %p93 = por %p91, %p92
      %p94 = scmp.ne.s32.totalorder %s80, %s81
      %p95 = scmp.eq.s32.totalorder %s25, 3
      %p96 = por %p94, %p95
      %p98 = scmp.ne.s32.totalorder %s81, %s97
      %p99 = scmp.eq.s32.totalorder %s25, 0
      %p100 = por %p98, %p99
      %s101 = sadd.s32 %s27, 1
      %p102 = scmp.lt.s32.totalorder %s101, 1
      %s103 = scalar_select %p102, %s101, 1
      %s104 = sadd.s32 %s34, 1
      %p105 = scmp.lt.s32.totalorder %s104, 1
      %s106 = scalar_select %p105, %s104, 1
      %s107 = ssub.s32 %s26, %s38
      %s108 = ssub.s32 %s103, %s106
      %s109 = sor.u32 %s107, %s108
      %p110 = scmp.eq.s32.totalorder %s109, 0
      %s112 = sadd.s32 %s111, 1
      %s113 = scalar_select %p110, %s111, %s112
      %p116 = pneg %p110
      %p117 = scmp.eq.s32.totalorder %s19, 3
      %p118 = por %p116, %p117
      %p119 = scmp.ne.s32.totalorder %s111, %s114
      %p120 = scmp.eq.s32.totalorder %s19, 0
      %p121 = por %p119, %p120
      %p122 = scmp.ne.s32.totalorder %s111, %s114
      %p123 = scmp.eq.s32.totalorder %s24, 3
      %p124 = por %p122, %p123
      %p125 = scmp.ne.s32.totalorder %s114, %s115
      %p126 = scmp.eq.s32.totalorder %s24, 0
      %p127 = por %p125, %p126
      %p128 = scmp.ne.s32.totalorder %s114, %s115
      %p129 = scmp.eq.s32.totalorder %s25, 3
      %p130 = por %p128, %p129
      %p132 = scmp.ne.s32.totalorder %s115, %s131
      %p133 = scmp.eq.s32.totalorder %s25, 0
      %p134 = por %p132, %p133
      %s136 = sadd.s32 %s135, 1
      %p139 = scmp.eq.s32.totalorder %s19, 3
      %p140 = scmp.ne.s32.totalorder %s135, %s137
      %p141 = scmp.eq.s32.totalorder %s19, 0
      %p142 = por %p140, %p141
      %p143 = scmp.ne.s32.totalorder %s135, %s137
      %p144 = scmp.eq.s32.totalorder %s24, 3
      %p145 = por %p143, %p144
      %p146 = scmp.ne.s32.totalorder %s137, %s138
      %p147 = scmp.eq.s32.totalorder %s24, 0
      %p148 = por %p146, %p147
      %p149 = scmp.ne.s32.totalorder %s137, %s138
      %p150 = scmp.eq.s32.totalorder %s25, 3
      %p151 = por %p149, %p150
      %p153 = scmp.ne.s32.totalorder %s138, %s152
      %p154 = scmp.eq.s32.totalorder %s25, 0
      %p155 = por %p153, %p154
      %s156 = ssub.s32 %s26, %s38
      %s157 = ssub.s32 %s27, %s34
      %s158 = sor.u32 %s156, %s157
      %p159 = scmp.eq.s32.totalorder %s158, 0
      %s161 = sadd.s32 %s160, 1
      %s162 = scalar_select %p159, %s160, %s161
      %p165 = pneg %p159
      %p166 = scmp.eq.s32.totalorder %s19, 3
      %p167 = por %p165, %p166
      %p168 = scmp.ne.s32.totalorder %s160, %s163
      %p169 = scmp.eq.s32.totalorder %s19, 0
      %p170 = por %p168, %p169
      %p171 = scmp.ne.s32.totalorder %s160, %s163
      %p172 = scmp.eq.s32.totalorder %s24, 3
      %p173 = por %p171, %p172
      %p174 = scmp.ne.s32.totalorder %s163, %s164
      %p175 = scmp.eq.s32.totalorder %s24, 0
      %p176 = por %p174, %p175
      %p177 = scmp.ne.s32.totalorder %s163, %s164
      %p178 = scmp.eq.s32.totalorder %s25, 3
      %p179 = por %p177, %p178
      %p181 = scmp.ne.s32.totalorder %s164, %s180
      %p182 = scmp.eq.s32.totalorder %s25, 0
      %p183 = por %p181, %p182
      %p184 = scmp.le.s32.totalorder 1, %s19
      %p185 = scmp.lt.s32.totalorder %s19, 5
      %p186 = pnand %p184, %p185
      %p187 = pneg %p186
      // Predicated region
      $region9: #{tpu_custom_call.1} parent=5 // pred_check
        _
      $region10: #{tpu_custom_call.1} parent=5 // pred_check_branch
        %189 = sbr.rel (%p186) target = $region12
      $region11: #{tpu_custom_call.1} parent=5 // pred_region
        %s190 = ssub.s32 %s19, 1
        // Predicated region
        $region13: #{tpu_custom_call.1} parent=11 // pred_check
          %p191 = pneg %p148
        $region14: #{tpu_custom_call.1} parent=11 // pred_check_branch
          %193 = sbr.rel (%p191) target = $region16
        $region15: #{tpu_custom_call.1} parent=11 // pred_region
          _
        $region16: #{tpu_custom_call.1} parent=11 // pred_fallthru
          _
      $region12: #{tpu_custom_call.1} parent=5 // pred_fallthru
        _
      %p194 = scmp.lt.s32.totalorder %s19, 4
      // Predicated region
      $region17: #{tpu_custom_call.1} parent=5 // pred_check
        %p195 = pneg %p194
      $region18: #{tpu_custom_call.1} parent=5 // pred_check_branch
        %197 = sbr.rel (%p195) target = $region20
      $region19: #{tpu_custom_call.1} parent=5 // pred_region
        // Predicated region
        $region21: #{tpu_custom_call.1} parent=19 // pred_check
          %p198 = pneg %p59
        $region22: #{tpu_custom_call.1} parent=19 // pred_check_branch
          %200 = sbr.rel (%p198) target = $region24
        $region23: #{tpu_custom_call.1} parent=19 // pred_region
          %s201 = sand.u32 %s49, 1
          %s202 = scalar_lea.sflag [#allocation3], %s201
          %s203 = sand.u32 %s49, 1
          %s204 = smul.addr %s203, 4
          %s205 = scalar_lea.vmem [#allocation2], %s204
          %s206 = ssub.s32 %s27, 1
          %p207 = scmp.gt.s32.totalorder %s206, 0
          %s208 = scalar_select %p207, %s206, 0
          %s210 = ssub.s32 64, 64
          %211 = vsyncadd %s202, %s210
          %s212 = smul.addr %s26, 2
          %s213 = sadd.s32 %s208, %s212
          %s214 = smul.addr %s213, 64
          %s215 = scalar_lea.hbm %s0, %s214
          %s217 = sshll.u32 %s205, 4
          %s218 = int_to_ptr.vmem [resolvable:$true] %s217
          %220 = dma.hbm_to_vmem [thread:$0]  %s215, 64, %s218, %s202
        $region24: #{tpu_custom_call.1} parent=19 // pred_fallthru
          _
        // Predicated region
        $region25: #{tpu_custom_call.1} parent=19 // pred_check
          %p221 = pneg %p87
        $region26: #{tpu_custom_call.1} parent=19 // pred_check_branch
          %223 = sbr.rel (%p221) target = $region28
        $region27: #{tpu_custom_call.1} parent=19 // pred_region
          %s224 = sand.u32 %s19, 1
          %s225 = scalar_lea.sflag [#allocation6], %s224
          %s226 = sand.u32 %s77, 1
          %s227 = smul.addr %s226, 4
          %s228 = scalar_lea.vmem [#allocation5], %s227
          %s230 = ssub.s32 64, 64
          %231 = vsyncadd %s225, %s230
          %s232 = smul.addr %s26, 2
          %s233 = sadd.s32 %s27, %s232
          %s234 = smul.addr %s233, 64
          %s235 = scalar_lea.hbm %s1, %s234
          %s237 = sshll.u32 %s228, 4
          %s238 = int_to_ptr.vmem [resolvable:$true] %s237
          %240 = dma.hbm_to_vmem [thread:$0]  %s235, 64, %s238, %s225
        $region28: #{tpu_custom_call.1} parent=19 // pred_fallthru
          _
        // Predicated region
        $region29: #{tpu_custom_call.1} parent=19 // pred_check
          %p241 = pneg %p121
        $region30: #{tpu_custom_call.1} parent=19 // pred_check_branch
          %243 = sbr.rel (%p241) target = $region32
        $region31: #{tpu_custom_call.1} parent=19 // pred_region
          %s244 = sand.u32 %s19, 1
          %s245 = scalar_lea.sflag [#allocation6], %s244
          %s246 = sand.u32 %s111, 1
          %s247 = smul.addr %s246, 4
          %s248 = scalar_lea.vmem [#allocation7], %s247
          %s249 = sadd.s32 %s27, 1
          %p250 = scmp.lt.s32.totalorder %s249, 1
          %s251 = scalar_select %p250, %s249, 1
          %s253 = ssub.s32 64, 64
          %254 = vsyncadd %s245, %s253
          %s255 = smul.addr %s26, 2
          %s256 = sadd.s32 %s251, %s255
          %s257 = smul.addr %s256, 64
          %s258 = scalar_lea.hbm %s2, %s257
          %s260 = sshll.u32 %s248, 4
          %s261 = int_to_ptr.vmem [resolvable:$true] %s260
          %263 = dma.hbm_to_vmem [thread:$0]  %s258, 64, %s261, %s245
        $region32: #{tpu_custom_call.1} parent=19 // pred_fallthru
          _
      $region20: #{tpu_custom_call.1} parent=5 // pred_fallthru
        _
      %p264 = scmp.le.s32.totalorder 1, %s19
      %p265 = scmp.lt.s32.totalorder %s19, 5
      %p266 = pnand %p264, %p265
      %p267 = pneg %p266
      // Predicated region
      $region33: #{tpu_custom_call.1} parent=5 // pred_check
        _
      $region34: #{tpu_custom_call.1} parent=5 // pred_check_branch
        %269 = sbr.rel (%p266) target = $region36
      $region35: #{tpu_custom_call.1} parent=5 // pred_region
        %s270 = ssub.s32 %s19, 1
        %s271 = sand.u32 %s52, 1
        %s272 = scalar_lea.sflag [#allocation3], %s271
        %s273 = sand.u32 %s52, 1
        %s274 = smul.addr %s273, 4
        %s275 = scalar_lea.vmem [#allocation2], %s274
        // Predicated region
        $region37: #{tpu_custom_call.1} parent=35 // pred_check
          %p276 = pneg %p65
        $region38: #{tpu_custom_call.1} parent=35 // pred_check_branch
          %278 = sbr.rel (%p276) target = $region40
        $region39: #{tpu_custom_call.1} parent=35 // pred_region
          %279 = dma.done %s272, 64
        $region40: #{tpu_custom_call.1} parent=35 // pred_fallthru
          _
        %s280 = sand.u32 %s24, 1
        %s281 = scalar_lea.sflag [#allocation6], %s280
        %s282 = sand.u32 %s80, 1
        %s283 = smul.addr %s282, 4
        %s284 = scalar_lea.vmem [#allocation5], %s283
        // Predicated region
        $region41: #{tpu_custom_call.1} parent=35 // pred_check
          %p285 = pneg %p93
        $region42: #{tpu_custom_call.1} parent=35 // pred_check_branch
          %287 = sbr.rel (%p285) target = $region44
        $region43: #{tpu_custom_call.1} parent=35 // pred_region
          %288 = dma.done %s281, 64
        $region44: #{tpu_custom_call.1} parent=35 // pred_fallthru
          _
        %s289 = sand.u32 %s24, 1
        %s290 = scalar_lea.sflag [#allocation6], %s289
        %s291 = sand.u32 %s114, 1
        %s292 = smul.addr %s291, 4
        %s293 = scalar_lea.vmem [#allocation7], %s292
        // Predicated region
        $region45: #{tpu_custom_call.1} parent=35 // pred_check
          %p294 = pneg %p127
        $region46: #{tpu_custom_call.1} parent=35 // pred_check_branch
          %296 = sbr.rel (%p294) target = $region48
        $region47: #{tpu_custom_call.1} parent=35 // pred_region
          %297 = dma.done %s290, 64
        $region48: #{tpu_custom_call.1} parent=35 // pred_fallthru
          _
        %s298 = sand.u32 %s52, 1
        %s299 = scalar_lea.sflag [#allocation3], %s298
        %s300 = sand.u32 %s52, 1
        %s301 = smul.addr %s300, 4
        %s302 = scalar_lea.vmem [#allocation2], %s301
        %p303 = pneg %p65
        %p304 = pneg %p62
        %s305 = sand.u32 %s24, 1
        %s306 = scalar_lea.sflag [#allocation6], %s305
        %s307 = sand.u32 %s80, 1
        %s308 = smul.addr %s307, 4
        %s309 = scalar_lea.vmem [#allocation5], %s308
        %p310 = pneg %p93
        %p311 = pneg %p90
        %s312 = sand.u32 %s24, 1
        %s313 = scalar_lea.sflag [#allocation6], %s312
        %s314 = sand.u32 %s114, 1
        %s315 = smul.addr %s314, 4
        %s316 = scalar_lea.vmem [#allocation7], %s315
        %p317 = pneg %p127
        %p318 = pneg %p124
        %p319 = pneg %p148
        %p320 = pneg %p145
        %p321 = pneg %p176
        %p322 = pneg %p173
        %s323 = sand.u32 %s163, 1
        %s324 = scalar_lea.sflag [#allocation4], %s323
        %s325 = sand.u32 %s163, 1
        %s326 = smul.addr %s325, 8
        %s327 = scalar_lea.vmem [#allocation8], %s326
        %s328 = ssub.s32 %s29, 1
        %p329 = scmp.gt.s32.totalorder %s328, 0
        %s330 = scalar_select %p329, %s328, 0
        %s331 = sadd.s32 %s29, 1
        %p332 = scmp.lt.s32.totalorder %s331, 1
        %s333 = scalar_select %p332, %s331, 1
        %v334 = vld [vmem:[%s284] sm:$0xf]
        %v335 = vld [vmem:[%s275] sm:$0xf]
        %v336 = vld [vmem:[%s293] sm:$0xf]
        %p337 = scmp.gt.s32.totalorder %s29, 0
        %s338 = scalar_select %p337, 1, 0
        %v339 = vstv %s338
        %vm340 = vcmp.eq.s32.totalorder %v339, 1
        %v341 = vsel %vm340, %v335, 0.0
        %p342 = scmp.lt.s32.totalorder %s29, 1
        %s343 = scalar_select %p342, 1, 0
        %v344 = vstv %s343
        %vm345 = vcmp.eq.s32.totalorder %v344, 1
        %v346 = vsel %vm345, %v336, 0.0
        %348 = vrot.lane.b32.xlu0 %v341, 17
        %v349 = vpop.permute.xlu0 %348
        %352 = vrot.lane.b32.xlu0 %v334, 17
        %v353 = vpop.permute.xlu0 %352
        %356 = vrot.lane.b32.xlu0 %v346, 17
        %v357 = vpop.permute.xlu0 %356
        %vm359 = vcmask 7168
        %v360 = vsel %vm359, 0.0, %v349
        %vm361 = vcmask 138240
        %v362 = vsel %vm361, %v360, %v353
        %v363 = vsel %vm361, %v353, %v357
        %vm364 = vcmask 269312
        %v365 = vsel %vm364, %v363, 0.0
        %v366 = vlaneseq
        %v367 = vand.u32 %v366, 127
        %vm368 = vcmp.lt.s32.totalorder %v367, 0
        %v369 = vsub.s32 0, %v367
        %v370 = vsel %vm368, %v369, %v367
        %v371 = vshrl.u32 %v370, 4
        %v372 = vand.u32 %v370, 15
        %v373 = vsub.s32 0, %v372
        %v374 = vsel %vm368, %v373, %v372
        %vm375 = vcmp.ne.s32.totalorder %v374, 0
        %vm376 = vcmp.lt.s32.totalorder %v374, 0
        %vm377 = vmand %vm376, %vm375
        %v378 = vadd.s32 %v374, 16
        %v379 = vsel %vm377, %v378, %v374
        %vm380 = vcmp.ne.s32.totalorder %v379, 0
        %vm381 = vcmp.ne.s32.totalorder %v379, 15
        %v382 = vsel %vm380, 1, 0
        %vm383 = vcmp.eq.s32.totalorder %v382, 1
        %v384 = vsel %vm383, %v362, 0.0
        %v385 = vsel %vm381, 1, 0
        %vm386 = vcmp.eq.s32.totalorder %v385, 1
        %389 = vrot.lane.b32.xlu0 %v362, 126
        %v390 = vpop.permute.xlu0 %389
        %391 = vrot.lane.b32.xlu0 %v365, 126
        %v392 = vpop.permute.xlu0 %391
        %vm393 = vcmask 1031168
        %v394 = vsel %vm393, %v390, %v392
        %v396 = vsel %vm386, %v394, 0.0
        %397 = vrot.lane.b32.xlu0 %v362, 112
        %v398 = vpop.permute.xlu0 %397
        %399 = vrot.lane.b32.xlu0 %v365, 112
        %v400 = vpop.permute.xlu0 %399
        %vm401 = vcmask 916480
        %v402 = vsel %vm401, %v398, %v400
        %v404 = vsel %vm383, %v402, 0.0
        %405 = vrot.lane.b32.xlu0 %v362, 110
        %v406 = vpop.permute.xlu0 %405
        %407 = vrot.lane.b32.xlu0 %v365, 110
        %v408 = vpop.permute.xlu0 %407
        %vm409 = vcmask 900096
        %v410 = vsel %vm409, %v406, %v408
        %v412 = vsel %vm386, %v410, 0.0
        %413 = vrot.lane.b32.xlu0 %v362, 96
        %v414 = vpop.permute.xlu0 %413
        %415 = vrot.lane.b32.xlu0 %v365, 96
        %v416 = vpop.permute.xlu0 %415
        %vm417 = vcmask 785408
        %v418 = vsel %vm417, %v414, %v416
        %v420 = vsel %vm383, %v418, 0.0
        %421 = vrot.lane.b32.xlu0 %v362, 94
        %v422 = vpop.permute.xlu0 %421
        %423 = vrot.lane.b32.xlu0 %v365, 94
        %v424 = vpop.permute.xlu0 %423
        %vm425 = vcmask 769024
        %v426 = vsel %vm425, %v422, %v424
        %v428 = vsel %vm386, %v426, 0.0
        %v429 = vrot.slane %v362, 4
        %v430 = vrot.slane %v365, 4
        %431 = vrot.lane.b32.xlu0 %v429, 127
        %v432 = vpop.permute.xlu0 %431
        %433 = vrot.lane.b32.xlu0 %v430, 127
        %v434 = vpop.permute.xlu0 %433
        %vm435 = vcmask 1039360
        %v436 = vsel %vm435, %v432, %v434
        %v439 = vrot.slane %v404, 4
        %441 = vrot.lane.b32.xlu0 %v362, 111
        %v442 = vpop.permute.xlu0 %441
        %443 = vrot.lane.b32.xlu0 %v365, 111
        %v444 = vpop.permute.xlu0 %443
        %vm445 = vcmask 908288
        %v446 = vsel %vm445, %v442, %v444
        %v449 = vrot.slane %v412, 4
        %451 = vrot.lane.b32.xlu0 %v429, 95
        %v452 = vpop.permute.xlu0 %451
        %453 = vrot.lane.b32.xlu0 %v430, 95
        %v454 = vpop.permute.xlu0 %453
        %vm455 = vcmask 777216
        %v456 = vsel %vm455, %v452, %v454
        %vm458 = vcmask 1043456
        %v459 = vsel %vm458, %v384, %v436
        %v460 = vsel %vm458, %v396, %v439
        %v461 = vsel %vm458, %v446, %v449
        %v462 = vsel %vm458, %v420, %v456
        %v463 = vld [vmem:[%s3] sm:$0xff]
        %vm464 = vcmask 293888
        %v466 = vsel %vm464, %v463, 0
        %v469 = vsel %vm458, %v428, 0
        %471 = vmatprep.subr.mxu0 0.0
        %472 = vmatpush1.msra.mxu0 %v459
        %473 = vmatprep.subr.mxu0 0.0
        %474 = vmatpush1.msra.mxu0 %v460
        %475 = vmatprep.subr.mxu0 0.0
        %476 = vmatpush1.msra.mxu0 %v461
        %477 = vmatprep.subr.mxu0 0.0
        %478 = vmatpush1.msra.mxu0 %v462
        %479 = vmatprep.subr.mxu0 0.0
        %480 = vmatpush1.msra.mxu0 %v469
        %481 = vmatprep.subr.mxu0 0.0
        %482 = vmatpush1.msra.mxu0 0.0
        %483 = vmatprep.subr.mxu0 0.0
        %484 = vmatpush1.msra.mxu0 0.0
        %485 = vmatprep.subr.mxu0 0.0
        %486 = vmatpush1.msra.mxu0 0.0
        %487 = vmatprep.subr.mxu0 0.0
        %488 = vmatpush1.msra.mxu0 0.0
        %489 = vmatprep.subr.mxu0 0.0
        %490 = vmatpush1.msra.mxu0 0.0
        %491 = vmatprep.subr.mxu0 0.0
        %492 = vmatpush1.msra.mxu0 0.0
        %493 = vmatprep.subr.mxu0 0.0
        %494 = vmatpush1.msra.mxu0 0.0
        %495 = vmatprep.subr.mxu0 0.0
        %496 = vmatpush1.msra.mxu0 0.0
        %497 = vmatprep.subr.mxu0 0.0
        %498 = vmatpush1.msra.mxu0 0.0
        %499 = vmatprep.subr.mxu0 0.0
        %500 = vmatpush1.msra.mxu0 0.0
        %501 = vmatprep.subr.mxu0 0.0
        %502 = vmatpush1.msra.mxu0 0.0
        %503 = vmatprep.subr.mxu0 0.0
        %504 = vmatpush1.msra.mxu0 0.0
        %505 = vmatprep.subr.mxu0 0.0
        %506 = vmatpush1.msra.mxu0 0.0
        %507 = vmatprep.subr.mxu0 0.0
        %508 = vmatpush1.msra.mxu0 0.0
        %509 = vmatprep.subr.mxu0 0.0
        %510 = vmatpush1.msra.mxu0 0.0
        %511 = vmatprep.subr.mxu0 0.0
        %512 = vmatpush1.msra.mxu0 0.0
        %513 = vmatprep.subr.mxu0 0.0
        %514 = vmatpush1.msra.mxu0 0.0
        %515 = vmatprep.subr.mxu0 0.0
        %516 = vmatpush1.msra.mxu0 0.0
        %517 = vmatprep.subr.mxu0 0.0
        %518 = vmatpush1.msra.mxu0 0.0
        %519 = vmatprep.subr.mxu0 0.0
        %520 = vmatpush1.msra.mxu0 0.0
        %521 = vmatprep.subr.mxu0 0.0
        %522 = vmatpush1.msra.mxu0 0.0
        %523 = vmatprep.subr.mxu0 0.0
        %524 = vmatpush1.msra.mxu0 0.0
        %525 = vmatprep.subr.mxu0 0.0
        %526 = vmatpush1.msra.mxu0 0.0
        %527 = vmatprep.subr.mxu0 0.0
        %528 = vmatpush1.msra.mxu0 0.0
        %529 = vmatprep.subr.mxu0 0.0
        %530 = vmatpush1.msra.mxu0 0.0
        %531 = vmatprep.subr.mxu0 0.0
        %532 = vmatpush1.msra.mxu0 0.0
        %533 = vmatprep.subr.mxu0 0.0
        %534 = vmatpush1.msra.mxu0 0.0
        %535 = vmatprep.mubr.f32.mxu0 0.0
        %536 = vmatmul.mubr.f32.gmra.mrb[0].mxu0 %v466
        %v537 = vpop.f32.mrb[0].mxu0
        %v538 = vadd.f32 0.0, %v537
        %v539 = vpop.f32.mrb[0].mxu0
        %540 = vdwg.mxu0
        %541 = vst [vmem:[%s327] sm:$0xff] %v538
        %s542 = sand.u32 %s163, 1
        %s543 = scalar_lea.sflag [#allocation4], %s542
        %s544 = sand.u32 %s163, 1
        %s545 = smul.addr %s544, 8
        %s546 = scalar_lea.vmem [#allocation8], %s545
        // Predicated region
        $region49: #{tpu_custom_call.1} parent=35 // pred_check
          %p547 = pneg %p173
        $region50: #{tpu_custom_call.1} parent=35 // pred_check_branch
          %549 = sbr.rel (%p547) target = $region52
        $region51: #{tpu_custom_call.1} parent=35 // pred_region
          %s551 = ssub.s32 128, 128
          %552 = vsyncadd %s543, %s551
          %s553 = smul.addr %s28, 2
          %s554 = sadd.s32 %s29, %s553
          %s555 = smul.addr %s554, 128
          %s556 = scalar_lea.hbm %s4, %s555
          %s558 = sshll.u32 %s546, 4
          %s559 = int_to_ptr.vmem [resolvable:$true] %s558
          %561 = dma.vmem_to_hbm [thread:$0]  %s559, 128, %s556, %s543
        $region52: #{tpu_custom_call.1} parent=35 // pred_fallthru
          _
      $region36: #{tpu_custom_call.1} parent=5 // pred_fallthru
        _
      %p562 = scmp.le.s32.totalorder 2, %s19
      // Predicated region
      $region53: #{tpu_custom_call.1} parent=5 // pred_check
        %p563 = pneg %p562
      $region54: #{tpu_custom_call.1} parent=5 // pred_check_branch
        %565 = sbr.rel (%p563) target = $region56
      $region55: #{tpu_custom_call.1} parent=5 // pred_region
        %s566 = ssub.s32 %s19, 2
        // Predicated region
        $region57: #{tpu_custom_call.1} parent=55 // pred_check
          %p567 = pneg %p179
        $region58: #{tpu_custom_call.1} parent=55 // pred_check_branch
          %569 = sbr.rel (%p567) target = $region60
        $region59: #{tpu_custom_call.1} parent=55 // pred_region
          %s570 = sand.u32 %s164, 1
          %s571 = scalar_lea.sflag [#allocation4], %s570
          %s572 = sand.u32 %s164, 1
          %s573 = smul.addr %s572, 8
          %s574 = scalar_lea.vmem [#allocation8], %s573
          %575 = dma.done %s571, 128
        $region60: #{tpu_custom_call.1} parent=55 // pred_fallthru
          _
      $region56: #{tpu_custom_call.1} parent=5 // pred_fallthru
        _
    $region6: #{tpu_custom_call.1} parent=1 // loop_footer
      %s23 = sadd.s32 1, %s19
    $region7: #{tpu_custom_call.1} parent=1 // loop_footer_branch
      %18 = sbr.rel target = $region3
    $region8: #{tpu_custom_call.1} parent=1 // loop_exit
      _
    %576 = vsyncpa [#allocation3], 1
    %s577 = scalar_lea.sflag [#allocation3], 1
    %578 = vsyncpa %s577, 1
    %579 = vsyncpa [#allocation6], 1
    %s580 = scalar_lea.sflag [#allocation6], 1
    %581 = vsyncpa %s580, 1
    %582 = vsyncpa [#allocation4], 1
    %s583 = scalar_lea.sflag [#allocation4], 1
    %584 = vsyncpa %s583, 1

</llo_original>
